<compile_context>
chip_gen: v5e
topology: v5e:2x2
jax: 0.10.0
libtpu: 0.0.40
codegen_flags: <defaults>
</compile_context>

<pallas_src>
import functools

import jax
import jax.numpy as jnp
from jax import lax
from jax.experimental import pallas as pl
from jax.experimental.pallas import tpu as pltpu


def _round_up(x, m):
    return ((x + m - 1) // m) * m


def _vmem_limit_bytes():
    """Generation-aware scoped-VMEM limit (~half of physical per TensorCore)."""
    cap = 64 * 1024 * 1024
    try:
        cap = int(pltpu.get_tpu_info().vmem_capacity_bytes)
    except Exception:
        pass
    return max(32 * 1024 * 1024, cap // 2)


def _choose_tile(n, d, budget_bytes):
    """Largest tile that fits the VMEM budget, shrunk so the parallel row axis
    produces >= 2 tiles (feeds both v7x TensorCores for mid-size N)."""
    def cost(t):
        # rt + ct double-buffered f32 blocks + ~6 (tile, tile) f32 temporaries.
        return 4 * t * d * 4 + 6 * t * t * 4

    tile = 512
    while tile > 64 and cost(tile) > budget_bytes:
        tile //= 2
    if n <= 2 * tile:
        tile = max(8, _round_up((n + 1) // 2, 8))
    return tile


# ----------------------------------------------------------------- rbf kernel
def _mmd_rbf_tile_kernel(meta_ref, fval_ref, rt_ref, ct_ref, out_ref, *,
                         kernel_num, tile):
    """One (tile, tile) block of the pairwise RBF kernel matrix reduced with
    signed weights (+1/ns source rows, -1/nt target rows) into the per-row-tile
    accumulator.  Only the upper triangle (j >= i) is computed; off-diagonal
    tiles count twice (K is symmetric)."""
    i = pl.program_id(0)
    j = pl.program_id(1)

    @pl.when(j == 0)
    def _init():
        out_ref[...] = jnp.zeros_like(out_ref)

    @pl.when(j >= i)
    def _compute():
        rt = rt_ref[...]                                    # (tile, D)
        ct = ct_ref[...]                                    # (tile, D)
        rtf = rt.astype(jnp.float32)
        ctf = ct.astype(jnp.float32)

        # Gram tile on the MXU; contraction over dim 1 of both operands
        # (no explicit transpose of ct is emitted).
        gram = lax.dot_general(rt, ct, (((1,), (1,)), ((), ())),
                               preferred_element_type=jnp.float32)

        # Row / column squared norms recomputed in-kernel (no DMA streams).
        sqr = jnp.sum(rtf * rtf, axis=1, keepdims=True)               # (tile,1)
        ones = jnp.ones((1, rtf.shape[1]), jnp.float32)
        sqc = lax.dot_general(ones, ctf * ctf, (((1,), (1,)), ((), ())),
                              preferred_element_type=jnp.float32)     # (1,tile)

        # Clamp at 0 to match the explicit-difference PyTorch reference.
        l2 = jnp.maximum(sqr + sqc - 2.0 * gram, 0.0)

        # Sum of RBF kernels at kernel_num scales; fval_ref[2+s] holds the
        # precomputed negated reciprocal bandwidths (scalar multiplies + exp).
        ksum = jnp.exp(l2 * fval_ref[2])
        for s in range(1, kernel_num):
            ksum = ksum + jnp.exp(l2 * fval_ref[2 + s])

        # Signed weights from SMEM scalars + iota (padded rows get weight 0).
        ns = meta_ref[0]
        nv = meta_ref[1]
        inv_ns = fval_ref[0]
        neg_inv_nt = fval_ref[1]
        ridx = i * tile + lax.broadcasted_iota(jnp.int32, (tile, 1), 0)
        cidx = j * tile + lax.broadcasted_iota(jnp.int32, (1, tile), 1)
        wr = jnp.where(ridx < ns, inv_ns,
                       jnp.where(ridx < nv, neg_inv_nt, 0.0))
        wc = jnp.where(cidx < ns, inv_ns,
                       jnp.where(cidx < nv, neg_inv_nt, 0.0))

        # Signed quadratic-form contribution of this tile: w_r^T K w_c.
        part = jnp.sum(jnp.sum(ksum * wc, axis=1, keepdims=True) * wr)
        part = part * jnp.where(i == j, 1.0, 2.0)     # symmetric off-diagonal
        out_ref[...] += part


@functools.partial(
    jax.jit,
    static_argnames=("kernel_mul", "kernel_num", "fix_sigma", "use_bf16_gram"))
def _mmd_rbf_loss(source, target, *, kernel_mul, kernel_num, fix_sigma,
                  use_bf16_gram):
    source = source.astype(jnp.float32)
    target = target.astype(jnp.float32)
    ns, d = source.shape
    nt, _ = target.shape
    n = ns + nt
    kn = int(kernel_num)
    km = float(kernel_mul)

    total = jnp.concatenate([source, target], axis=0)          # (n, d) f32

    # --- bandwidth (fix_sigma falsy): analytic, single streaming pass ---
    #   sum_ij ||t_i - t_j||^2 = 2*N*sum_i||t_i||^2 - 2*||sum_i t_i||^2
    if fix_sigma:
        bandwidth = jnp.float32(fix_sigma)
    else:
        sum_sq = jnp.sum(total * total)
        col_sum = jnp.sum(total, axis=0)
        sum_l2 = 2.0 * n * sum_sq - 2.0 * jnp.dot(col_sum, col_sum)
        bandwidth = sum_l2 / jnp.float32(n * n - n)
    bandwidth = bandwidth / jnp.float32(km ** (kn // 2))
    scales = jnp.asarray([km ** s for s in range(kn)], jnp.float32)
    neg_inv_bw = (-1.0 / (bandwidth * scales)).astype(jnp.float32)     # (kn,)

    # SMEM scalars: [ns, n] (int32) and [1/ns, -1/nt, neg_inv_bw...] (f32).
    meta = jnp.asarray([ns, n], jnp.int32)
    fvals = jnp.concatenate(
        [jnp.asarray([1.0 / ns, -1.0 / nt], jnp.float32), neg_inv_bw])

    # --- tiling: VMEM bounded regardless of N, generation aware ---
    vmem_limit = _vmem_limit_bytes()
    tile = _choose_tile(n, d, vmem_limit // 2)
    n_pad = _round_up(n, tile)
    n_tiles = n_pad // tile

    if n_pad > n:
        total = jnp.pad(total, ((0, n_pad - n), (0, 0)))
    if use_bf16_gram:
        # TODO(synk): bf16 operands halve streamed DMA bytes and hit the native
        # MXU path, but worsen cancellation in sqr+sqc-2*gram; off by default.
        total = total.astype(jnp.bfloat16)

    kernel = functools.partial(_mmd_rbf_tile_kernel, kernel_num=kn, tile=tile)
    out = pl.pallas_call(
        kernel,
        out_shape=jax.ShapeDtypeStruct((n_tiles * 8, 128), jnp.float32),
        grid=(n_tiles, n_tiles),
        in_specs=[
            pl.BlockSpec(memory_space=pltpu.MemorySpace.SMEM),   # meta (int32)
            pl.BlockSpec(memory_space=pltpu.MemorySpace.SMEM),   # fvals (f32)
            pl.BlockSpec((tile, d), lambda i, j: (i, 0)),        # row tile
            pl.BlockSpec((tile, d), lambda i, j: (j, 0)),        # col tile
        ],
        # One lane-dense (8,128) accumulator block per row tile, resident
        # across the j (reduction) axis.
        out_specs=pl.BlockSpec((8, 128), lambda i, j: (i, 0)),
        compiler_params=pltpu.CompilerParams(
            dimension_semantics=("parallel", "arbitrary"),
            vmem_limit_bytes=int(vmem_limit),
        ),
    )(meta, fvals, total, total)

    # Each (8,128) block holds its row-tile partial broadcast over the block.
    return jnp.sum(out[::8, 0])


# -------------------------------------------------------------- linear kernel
def _mmd_linear_kernel(inv_ref, src_ref, tgt_ref, out_ref, acc_s, acc_t):
    i = pl.program_id(0)

    @pl.when(i == 0)
    def _init():
        acc_s[...] = jnp.zeros_like(acc_s)
        acc_t[...] = jnp.zeros_like(acc_t)
        out_ref[...] = jnp.zeros_like(out_ref)

    acc_s[...] += jnp.sum(src_ref[...].astype(jnp.float32), axis=0, keepdims=True)
    acc_t[...] += jnp.sum(tgt_ref[...].astype(jnp.float32), axis=0, keepdims=True)

    @pl.when(i == pl.num_programs(0) - 1)
    def _fin():
        delta = acc_s[...] * inv_ref[0] - acc_t[...] * inv_ref[1]
        loss = jnp.sum(delta * delta)
        out_ref[...] = jnp.broadcast_to(loss, out_ref.shape).astype(out_ref.dtype)


@jax.jit
def _mmd_linear_loss(source, target):
    source = source.astype(jnp.float32)
    target = target.astype(jnp.float32)
    ns, d = source.shape
    nt, _ = target.shape
    nmax = max(ns, nt)
    tile = min(512, _round_up(nmax, 8))
    rows = _round_up(nmax, tile)
    n_tiles = rows // tile

    src = jnp.pad(source, ((0, rows - ns), (0, 0)))
    tgt = jnp.pad(target, ((0, rows - nt), (0, 0)))
    inv = jnp.asarray([1.0 / ns, 1.0 / nt], jnp.float32)

    out = pl.pallas_call(
        _mmd_linear_kernel,
        out_shape=jax.ShapeDtypeStruct((8, 128), jnp.float32),
        grid=(n_tiles,),
        in_specs=[
            pl.BlockSpec(memory_space=pltpu.MemorySpace.SMEM),   # [1/ns, 1/nt]
            pl.BlockSpec((tile, d), lambda i: (i, 0)),
            pl.BlockSpec((tile, d), lambda i: (i, 0)),
        ],
        out_specs=pl.BlockSpec((8, 128), lambda i: (0, 0)),
        scratch_shapes=[pltpu.VMEM((1, d), jnp.float32),
                        pltpu.VMEM((1, d), jnp.float32)],
        compiler_params=pltpu.CompilerParams(
            dimension_semantics=("arbitrary",),
            vmem_limit_bytes=int(_vmem_limit_bytes()),
        ),
    )(inv, src, tgt)
    return out[0, 0]


# -------------------------------------------------------------------- wrapper
class MMDLossPallas:
    """Pallas/TPU port of MMD_loss (rbf and linear kernel types)."""

    def __init__(self, kernel_type="rbf", kernel_mul=2.0, kernel_num=5,
                 use_bf16_gram=False):
        self.kernel_type = kernel_type
        self.kernel_mul = float(kernel_mul)
        self.kernel_num = int(kernel_num)
        self.fix_sigma = None   # NOTE: truthiness-tested, exactly as in PyTorch
        self.use_bf16_gram = bool(use_bf16_gram)

    def __call__(self, source, target):
        source = jnp.asarray(source, dtype=jnp.float32)
        target = jnp.asarray(target, dtype=jnp.float32)
        if self.kernel_type == "linear":
            return _mmd_linear_loss(source, target)
        elif self.kernel_type == "rbf":
            return _mmd_rbf_loss(source, target,
                                 kernel_mul=self.kernel_mul,
                                 kernel_num=self.kernel_num,
                                 fix_sigma=self.fix_sigma,
                                 use_bf16_gram=self.use_bf16_gram)
        else:
            raise ValueError(f"unknown kernel_type: {self.kernel_type}")


# ------------------------------------------------------------------ reference
def _mmd_rbf_reference(source, target, kernel_mul=2.0, kernel_num=5):
    """Plain-JAX reference mirroring the PyTorch module, for verification."""
    source = jnp.asarray(source, jnp.float32)
    target = jnp.asarray(target, jnp.float32)
    b = source.shape[0]
    total = jnp.concatenate([source, target], axis=0)
    n = total.shape[0]
    diff = total[None, :, :] - total[:, None, :]
    l2 = jnp.sum(diff * diff, axis=2)
    bandwidth = jnp.sum(l2) / (n * n - n)
    bandwidth = bandwidth / (kernel_mul ** (kernel_num // 2))
    kernels = sum(jnp.exp(-l2 / (bandwidth * kernel_mul ** i))
                  for i in range(kernel_num))
    xx = jnp.mean(kernels[:b, :b])
    yy = jnp.mean(kernels[b:, b:])
    xy = jnp.mean(kernels[:b, b:])
    yx = jnp.mean(kernels[b:, :b])
    return xx + yy - xy - yx


if __name__ == "__main__":
    key = jax.random.PRNGKey(0)
    k1, k2, k3 = jax.random.split(key, 3)
    batch, feat = 8, 32
    source = jax.random.normal(k1, (batch, feat), dtype=jnp.float32)
    target = jax.random.normal(k2, (batch, feat), dtype=jnp.float32) + 0.5

    mmd = MMDLossPallas(kernel_type="rbf", kernel_mul=2.0, kernel_num=5)
    loss = jax.block_until_ready(mmd(source, target))
    ref = _mmd_rbf_reference(source, target)
    assert jnp.allclose(loss, ref, rtol=1e-3, atol=1e-5), (loss, ref)

    # Asymmetric ns != nt exercises padding + signed weights + triangular grid.
    target2 = jax.random.normal(k3, (12, feat), dtype=jnp.float32) + 0.25
    loss2 = jax.block_until_ready(mmd(source, target2))
    ref2 = _mmd_rbf_reference(source, target2)
    assert jnp.allclose(loss2, ref2, rtol=1e-3, atol=1e-5), (loss2, ref2)

    # Linear path.
    mmd_lin = MMDLossPallas(kernel_type="linear")
    lin = jax.block_until_ready(mmd_lin(source, target))
    delta = jnp.mean(source, axis=0) - jnp.mean(target, axis=0)
    assert jnp.allclose(lin, jnp.dot(delta, delta), rtol=1e-4, atol=1e-5)

    print("KERNEL_OK")
</pallas_src>

<mosaic_0001>
module attributes {stable_mosaic.version = 11 : i64} {
  func.func @_mmd_rbf_tile_kernel(%arg0: i32, %arg1: i32, %arg2: memref<2xi32, #tpu.memory_space<smem>>, %arg3: memref<7xf32, #tpu.memory_space<smem>>, %arg4: memref<8x32xf32, #tpu.memory_space<vmem>>, %arg5: memref<8x32xf32, #tpu.memory_space<vmem>>, %arg6: memref<8x128xf32, #tpu.memory_space<vmem>>) attributes {dimension_semantics = [#tpu.dimension_semantics<parallel>, #tpu.dimension_semantics<arbitrary>], iteration_bounds = array<i64: 2, 2>, scalar_prefetch = 0 : i64, scratch_operands = 0 : i64, tpu.core_type = #tpu.core_type<tc>, window_params = [{transform_indices = @transform_0, window_bounds = array<i64: 2>}, {transform_indices = @transform_1, window_bounds = array<i64: 7>}, {transform_indices = @transform_2, window_bounds = array<i64: 8, 32>}, {transform_indices = @transform_3, window_bounds = array<i64: 8, 32>}, {transform_indices = @transform_4, window_bounds = array<i64: 8, 128>}]} {
    %c0_i32 = arith.constant 0 : i32
    %0 = arith.cmpi eq, %arg1, %c0_i32 : i32
    %1 = arith.extui %0 : i1 to i32
    %c0_i32_0 = arith.constant 0 : i32
    %2 = arith.cmpi ne, %1, %c0_i32_0 : i32
    scf.if %2 {
      %cst = arith.constant 0.000000e+00 : f32
      %6 = vector.broadcast %cst : f32 to vector<8x128xf32>
      %c0 = arith.constant 0 : index
      %c0_2 = arith.constant 0 : index
      %7 = vector.load %arg6[%c0, %c0_2] : memref<8x128xf32, #tpu.memory_space<vmem>>, vector<8x128xf32>
      tpu.vector_store %arg6[%c0, %c0_2], %6 {strides = array<i32>} : memref<8x128xf32, #tpu.memory_space<vmem>>, vector<8x128xf32>,
    } else {
    }
    %3 = arith.cmpi sge, %arg1, %arg0 : i32
    %4 = arith.extui %3 : i1 to i32
    %c0_i32_1 = arith.constant 0 : i32
    %5 = arith.cmpi ne, %4, %c0_i32_1 : i32
    scf.if %5 {
      %c0 = arith.constant 0 : index
      %c0_2 = arith.constant 0 : index
      %6 = vector.load %arg4[%c0, %c0_2] : memref<8x32xf32, #tpu.memory_space<vmem>>, vector<8x32xf32>
      %c0_3 = arith.constant 0 : index
      %c0_4 = arith.constant 0 : index
      %7 = vector.load %arg5[%c0_3, %c0_4] : memref<8x32xf32, #tpu.memory_space<vmem>>, vector<8x32xf32>
      %cst = arith.constant dense<0.000000e+00> : vector<8x8xf32>
      %8 = tpu.matmul %6, %7, %cst {dimension_numbers = #tpu.dot_dimension_numbers<[1], [1], [0], [0], [0, 0, 1, 0], [], []>} : vector<8x32xf32>, vector<8x32xf32>, vector<8x8xf32> -> vector<8x8xf32>
      %9 = arith.mulf %6, %6 : vector<8x32xf32>
      %cst_5 = arith.constant dense<0.000000e+00> : vector<8xf32>
      %10 = vector.multi_reduction <add>, %9, %cst_5 [1] : vector<8x32xf32> to vector<8xf32>
      %11 = vector.shape_cast %10 : vector<8xf32> to vector<8x1xf32>
      %cst_6 = arith.constant 1.000000e+00 : f32
      %12 = vector.broadcast %cst_6 : f32 to vector<1x32xf32>
      %13 = arith.mulf %7, %7 : vector<8x32xf32>
      %cst_7 = arith.constant dense<0.000000e+00> : vector<1x8xf32>
      %14 = tpu.matmul %12, %13, %cst_7 {dimension_numbers = #tpu.dot_dimension_numbers<[1], [1], [0], [0], [0, 0, 1, 0], [], []>} : vector<1x32xf32>, vector<8x32xf32>, vector<1x8xf32> -> vector<1x8xf32>
      %15 = vector.broadcast %11 : vector<8x1xf32> to vector<8x8xf32>
      %16 = vector.broadcast %14 : vector<1x8xf32> to vector<8x8xf32>
      %17 = arith.addf %15, %16 : vector<8x8xf32>
      %cst_8 = arith.constant 2.000000e+00 : f32
      %18 = vector.broadcast %cst_8 : f32 to vector<8x8xf32>
      %19 = arith.mulf %18, %8 : vector<8x8xf32>
      %20 = arith.subf %17, %19 : vector<8x8xf32>
      %cst_9 = arith.constant 0.000000e+00 : f32
      %21 = vector.broadcast %cst_9 : f32 to vector<8x8xf32>
      %22 = arith.maximumf %20, %21 : vector<8x8xf32>
      %c2 = arith.constant 2 : index
      %23 = memref.load %arg3[%c2] : memref<7xf32, #tpu.memory_space<smem>>
      %24 = vector.broadcast %23 : f32 to vector<8x8xf32>
      %25 = arith.mulf %22, %24 : vector<8x8xf32>
      %26 = math.exp %25 : vector<8x8xf32>
      %c3 = arith.constant 3 : index
      %27 = memref.load %arg3[%c3] : memref<7xf32, #tpu.memory_space<smem>>
      %28 = vector.broadcast %27 : f32 to vector<8x8xf32>
      %29 = arith.mulf %22, %28 : vector<8x8xf32>
      %30 = math.exp %29 : vector<8x8xf32>
      %31 = arith.addf %26, %30 : vector<8x8xf32>
      %c4 = arith.constant 4 : index
      %32 = memref.load %arg3[%c4] : memref<7xf32, #tpu.memory_space<smem>>
      %33 = vector.broadcast %32 : f32 to vector<8x8xf32>
      %34 = arith.mulf %22, %33 : vector<8x8xf32>
      %35 = math.exp %34 : vector<8x8xf32>
      %36 = arith.addf %31, %35 : vector<8x8xf32>
      %c5 = arith.constant 5 : index
      %37 = memref.load %arg3[%c5] : memref<7xf32, #tpu.memory_space<smem>>
      %38 = vector.broadcast %37 : f32 to vector<8x8xf32>
      %39 = arith.mulf %22, %38 : vector<8x8xf32>
      %40 = math.exp %39 : vector<8x8xf32>
      %41 = arith.addf %36, %40 : vector<8x8xf32>
      %c6 = arith.constant 6 : index
      %42 = memref.load %arg3[%c6] : memref<7xf32, #tpu.memory_space<smem>>
      %43 = vector.broadcast %42 : f32 to vector<8x8xf32>
      %44 = arith.mulf %22, %43 : vector<8x8xf32>
      %45 = math.exp %44 : vector<8x8xf32>
      %46 = arith.addf %41, %45 : vector<8x8xf32>
      %c0_10 = arith.constant 0 : index
      %47 = memref.load %arg2[%c0_10] : memref<2xi32, #tpu.memory_space<smem>>
      %c1 = arith.constant 1 : index
      %48 = memref.load %arg2[%c1] : memref<2xi32, #tpu.memory_space<smem>>
      %c0_11 = arith.constant 0 : index
      %49 = memref.load %arg3[%c0_11] : memref<7xf32, #tpu.memory_space<smem>>
      %c1_12 = arith.constant 1 : index
      %50 = memref.load %arg3[%c1_12] : memref<7xf32, #tpu.memory_space<smem>>
      %c8_i32 = arith.constant 8 : i32
      %51 = arith.muli %arg0, %c8_i32 : i32
      %52 = tpu.iota {dimensions = array<i32: 0>} : vector<8x1xi32>
      %53 = vector.broadcast %51 : i32 to vector<8x1xi32>
      %54 = arith.addi %53, %52 : vector<8x1xi32>
      %c8_i32_13 = arith.constant 8 : i32
      %55 = arith.muli %arg1, %c8_i32_13 : i32
      %56 = tpu.iota {dimensions = array<i32: 1>} : vector<1x8xi32>
      %57 = vector.broadcast %55 : i32 to vector<1x8xi32>
      %58 = arith.addi %57, %56 : vector<1x8xi32>
      %59 = vector.broadcast %47 : i32 to vector<8x1xi32>
      %60 = arith.cmpi slt, %54, %59 : vector<8x1xi32>
      %61 = vector.broadcast %48 : i32 to vector<8x1xi32>
      %62 = arith.cmpi slt, %54, %61 : vector<8x1xi32>
      %cst_14 = arith.constant 0.000000e+00 : f32
      %63 = vector.broadcast %50 : f32 to vector<8x1xf32>
      %64 = vector.broadcast %cst_14 : f32 to vector<8x1xf32>
      %65 = arith.select %62, %63, %64 : vector<8x1xi1>, vector<8x1xf32>
      %66 = vector.broadcast %49 : f32 to vector<8x1xf32>
      %67 = arith.select %60, %66, %65 : vector<8x1xi1>, vector<8x1xf32>
      %68 = vector.broadcast %47 : i32 to vector<1x8xi32>
      %69 = arith.cmpi slt, %58, %68 : vector<1x8xi32>
      %70 = vector.broadcast %48 : i32 to vector<1x8xi32>
      %71 = arith.cmpi slt, %58, %70 : vector<1x8xi32>
      %cst_15 = arith.constant 0.000000e+00 : f32
      %72 = vector.broadcast %50 : f32 to vector<1x8xf32>
      %73 = vector.broadcast %cst_15 : f32 to vector<1x8xf32>
      %74 = arith.select %71, %72, %73 : vector<1x8xi1>, vector<1x8xf32>
      %75 = vector.broadcast %49 : f32 to vector<1x8xf32>
      %76 = arith.select %69, %75, %74 : vector<1x8xi1>, vector<1x8xf32>
      %77 = vector.broadcast %76 : vector<1x8xf32> to vector<8x8xf32>
      %78 = arith.mulf %46, %77 : vector<8x8xf32>
      %cst_16 = arith.constant dense<0.000000e+00> : vector<8xf32>
      %79 = vector.multi_reduction <add>, %78, %cst_16 [1] : vector<8x8xf32> to vector<8xf32>
      %80 = vector.shape_cast %79 : vector<8xf32> to vector<8x1xf32>
      %81 = arith.mulf %80, %67 : vector<8x1xf32>
      %82 = vector.shape_cast %81 : vector<8x1xf32> to vector<1x8x1xf32>
      %cst_17 = arith.constant dense<0.000000e+00> : vector<1xf32>
      %83 = vector.multi_reduction <add>, %82, %cst_17 [1, 2] : vector<1x8x1xf32> to vector<1xf32>
      %84 = vector.shape_cast %83 : vector<1xf32> to vector<1x1x1xf32>
      %85 = vector.extract %84[0, 0, 0] : f32 from vector<1x1x1xf32>
      %86 = arith.cmpi eq, %arg0, %arg1 : i32
      %cst_18 = arith.constant 1.000000e+00 : f32
      %cst_19 = arith.constant 2.000000e+00 : f32
      %87 = arith.select %86, %cst_18, %cst_19 : f32
      %88 = arith.mulf %85, %87 : f32
      %c0_20 = arith.constant 0 : index
      %c0_21 = arith.constant 0 : index
      %89 = vector.load %arg6[%c0_20, %c0_21] : memref<8x128xf32, #tpu.memory_space<vmem>>, vector<8x128xf32>
      %90 = vector.broadcast %88 : f32 to vector<8x128xf32>
      %91 = arith.addf %89, %90 : vector<8x128xf32>
      %c0_22 = arith.constant 0 : index
      %c0_23 = arith.constant 0 : index
      %92 = vector.load %arg6[%c0_22, %c0_23] : memref<8x128xf32, #tpu.memory_space<vmem>>, vector<8x128xf32>
      tpu.vector_store %arg6[%c0_22, %c0_23], %91 {strides = array<i32>} : memref<8x128xf32, #tpu.memory_space<vmem>>, vector<8x128xf32>,
    } else {
    }
    return
  }
  func.func @transform_0(%arg0: i32, %arg1: i32) -> i32 {
    %c0_i32 = arith.constant 0 : i32
    %c0_i32_0 = arith.constant 0 : i32
    return %c0_i32 : i32
  }
  func.func @transform_1(%arg0: i32, %arg1: i32) -> i32 {
    %c0_i32 = arith.constant 0 : i32
    %c0_i32_0 = arith.constant 0 : i32
    return %c0_i32 : i32
  }
  func.func @transform_2(%arg0: i32, %arg1: i32) -> (i32, i32) {
    %c0_i32 = arith.constant 0 : i32
    %c0_i32_0 = arith.constant 0 : i32
    return %arg0, %c0_i32 : i32, i32
  }
  func.func @transform_3(%arg0: i32, %arg1: i32) -> (i32, i32) {
    %c0_i32 = arith.constant 0 : i32
    %c0_i32_0 = arith.constant 0 : i32
    return %arg1, %c0_i32 : i32, i32
  }
  func.func @transform_4(%arg0: i32, %arg1: i32) -> (i32, i32) {
    %c0_i32 = arith.constant 0 : i32
    %c0_i32_0 = arith.constant 0 : i32
    return %arg0, %c0_i32 : i32, i32
  }
}

</mosaic_0001>

<llo_original>
// kernel: _mmd_rbf_loss.1
$region0: #{_mmd_rbf_loss.1}
  #allocation0 [shape = 'u32[]', space=smem, size = 0x4, offset = 0x4, fixed_abs, tag = 'smem constant byte address 0x4 - core index']
  #allocation1 [shape = 'u32[72,128]{1,0:T(1,128)}', space=vmem, size = 0x9000, scoped, tag = 'internal scratch']
  %s0 = inlined_call_operand.vmem [shape: s32[2], index: 0, kind: input, shape index: {}]
  %s1 = inlined_call_operand.vmem [shape: f32[7], index: 1, kind: input, shape index: {}]
  %s2 = inlined_call_operand.vmem [shape: f32[16,32], index: 2, kind: input, shape index: {}, may-alias: {2,3}]
  %s3 = inlined_call_operand.vmem [shape: f32[16,32], index: 3, kind: input, shape index: {}, may-alias: {2,3}]
  %s4 = inlined_call_operand.vmem [shape: f32[16,128], index: 4, kind: output, shape index: {}]
  %s5 = sld [smem:[#allocation0]]
  $region65: #{_mmd_rbf_loss.1} parent=0
    _
  %s7 = ssub.s32 1, %s5
  %s8 = scalar_select 0, %s7, %s5
  $region1: #{_mmd_rbf_loss.1} parent=0
    #allocation2 [shape = 'u8[512]{0}', space=smem, size = 0x200, scoped, tag = 'input window, operand 0, single buffered']
    #allocation3 [shape = 's32[2]{0}', space=sflag, size = 0x8, scoped, tag = 'scoped memory for _mmd_rbf_loss.1']
    #allocation4 [shape = 'u8[512]{0}', space=smem, size = 0x200, scoped, tag = 'input window, operand 1, single buffered']
    #allocation5 [shape = 's32[1]{0}', space=sflag, size = 0x4, scoped, tag = 'scoped memory for _mmd_rbf_loss.1']
    %9 = vsyncpa [#allocation3], 0
    %10 = vsyncpa [#allocation5], 0
    loop: start=0, step=1, limit=6
    $region2: #{_mmd_rbf_loss.1} parent=1 // loop_pre_header
      _
    $region3: #{_mmd_rbf_loss.1} parent=1 // loop_header
      %s12 = sphi 0, %s16
      %p13 = scmp.ge.s32.totalorder %s12, 6
      %s19 = sphi 0, %s31
      %s20 = sphi 0, %s27
      %s21 = sphi 0, %s19
      %s22 = sphi 0, %s20
      %s23 = sphi 0, %s21
      %s24 = sphi 0, %s22
      %s32 = sphi 0, %s32
      %s34 = sphi 0, %s32
      %s35 = sphi 0, %s34
      %s49 = sphi 0, %s35
      %s53 = sphi 0, %s53
      %s55 = sphi 0, %s53
      %s56 = sphi 0, %s55
      %s70 = sphi 0, %s56
      %s76 = sphi 0, %s78
      %s79 = sphi 0, %s76
      %s80 = sphi 0, %s79
      %s96 = sphi 0, %s80
      %s102 = sphi 0, %s104
      %s105 = sphi 0, %s102
      %s106 = sphi 0, %s105
      %s122 = sphi 0, %s106
      %s128 = sphi 0, %s130
      %s131 = sphi 0, %s128
      %s132 = sphi 0, %s131
      %s148 = sphi 0, %s132
    $region4: #{_mmd_rbf_loss.1} parent=1 // loop_header_branch
      %15 = sbr.rel (%p13) target = $region8
    $region5: #{_mmd_rbf_loss.1} parent=1 // loop_body
      %s17 = ssub.s32 %s12, 1
      %s18 = ssub.s32 %s12, 2
      %s25 = sadd.s32 1, %s20
      %p26 = scmp.ge.s32.totalorder %s25, 2
      %s27 = scalar_select %p26, 0, %s25
      %s28 = sadd.s32 1, %s19
      %s29 = scalar_select %p26, %s28, %s19
      %p30 = scmp.ge.s32.totalorder %s29, 2
      %s31 = scalar_select %p30, 0, %s29
      %s33 = sadd.s32 %s32, 1
      %p36 = scmp.eq.s32.totalorder %s12, 3
      %p37 = scmp.ne.s32.totalorder %s32, %s34
      %p38 = scmp.eq.s32.totalorder %s12, 0
      %p39 = por %p37, %p38
      %p40 = scmp.ne.s32.totalorder %s32, %s34
      %p41 = scmp.eq.s32.totalorder %s17, 3
      %p42 = por %p40, %p41
      %p43 = scmp.ne.s32.totalorder %s34, %s35
      %p44 = scmp.eq.s32.totalorder %s17, 0
      %p45 = por %p43, %p44
      %p46 = scmp.ne.s32.totalorder %s34, %s35
      %p47 = scmp.eq.s32.totalorder %s18, 3
      %p48 = por %p46, %p47
      %p50 = scmp.ne.s32.totalorder %s35, %s49
      %p51 = scmp.eq.s32.totalorder %s18, 0
      %p52 = por %p50, %p51
      %s54 = sadd.s32 %s53, 1
      %p57 = scmp.eq.s32.totalorder %s12, 3
      %p58 = scmp.ne.s32.totalorder %s53, %s55
      %p59 = scmp.eq.s32.totalorder %s12, 0
      %p60 = por %p58, %p59
      %p61 = scmp.ne.s32.totalorder %s53, %s55
      %p62 = scmp.eq.s32.totalorder %s17, 3
      %p63 = por %p61, %p62
      %p64 = scmp.ne.s32.totalorder %s55, %s56
      %p65 = scmp.eq.s32.totalorder %s17, 0
      %p66 = por %p64, %p65
      %p67 = scmp.ne.s32.totalorder %s55, %s56
      %p68 = scmp.eq.s32.totalorder %s18, 3
      %p69 = por %p67, %p68
      %p71 = scmp.ne.s32.totalorder %s56, %s70
      %p72 = scmp.eq.s32.totalorder %s18, 0
      %p73 = por %p71, %p72
      %s74 = ssub.s32 %s19, %s31
      %p75 = scmp.eq.s32.totalorder %s74, 0
      %s77 = sadd.s32 %s76, 1
      %s78 = scalar_select %p75, %s76, %s77
      %p81 = pneg %p75
      %p82 = scmp.eq.s32.totalorder %s12, 3
      %p83 = por %p81, %p82
      %p84 = scmp.ne.s32.totalorder %s76, %s79
      %p85 = scmp.eq.s32.totalorder %s12, 0
      %p86 = por %p84, %p85
      %p87 = scmp.ne.s32.totalorder %s76, %s79
      %p88 = scmp.eq.s32.totalorder %s17, 3
      %p89 = por %p87, %p88
      %p90 = scmp.ne.s32.totalorder %s79, %s80
      %p91 = scmp.eq.s32.totalorder %s17, 0
      %p92 = por %p90, %p91
      %p93 = scmp.ne.s32.totalorder %s79, %s80
      %p94 = scmp.eq.s32.totalorder %s18, 3
      %p95 = por %p93, %p94
      %p97 = scmp.ne.s32.totalorder %s80, %s96
      %p98 = scmp.eq.s32.totalorder %s18, 0
      %p99 = por %p97, %p98
      %s100 = ssub.s32 %s20, %s27
      %p101 = scmp.eq.s32.totalorder %s100, 0
      %s103 = sadd.s32 %s102, 1
      %s104 = scalar_select %p101, %s102, %s103
      %p107 = pneg %p101
      %p108 = scmp.eq.s32.totalorder %s12, 3
      %p109 = por %p107, %p108
      %p110 = scmp.ne.s32.totalorder %s102, %s105
      %p111 = scmp.eq.s32.totalorder %s12, 0
      %p112 = por %p110, %p111
      %p113 = scmp.ne.s32.totalorder %s102, %s105
      %p114 = scmp.eq.s32.totalorder %s17, 3
      %p115 = por %p113, %p114
      %p116 = scmp.ne.s32.totalorder %s105, %s106
      %p117 = scmp.eq.s32.totalorder %s17, 0
      %p118 = por %p116, %p117
      %p119 = scmp.ne.s32.totalorder %s105, %s106
      %p120 = scmp.eq.s32.totalorder %s18, 3
      %p121 = por %p119, %p120
      %p123 = scmp.ne.s32.totalorder %s106, %s122
      %p124 = scmp.eq.s32.totalorder %s18, 0
      %p125 = por %p123, %p124
      %s126 = ssub.s32 %s19, %s31
      %p127 = scmp.eq.s32.totalorder %s126, 0
      %s129 = sadd.s32 %s128, 1
      %s130 = scalar_select %p127, %s128, %s129
      %p133 = pneg %p127
      %p134 = scmp.eq.s32.totalorder %s12, 3
      %p135 = por %p133, %p134
      %p136 = scmp.ne.s32.totalorder %s128, %s131
      %p137 = scmp.eq.s32.totalorder %s12, 0
      %p138 = por %p136, %p137
      %p139 = scmp.ne.s32.totalorder %s128, %s131
      %p140 = scmp.eq.s32.totalorder %s17, 3
      %p141 = por %p139, %p140
      %p142 = scmp.ne.s32.totalorder %s131, %s132
      %p143 = scmp.eq.s32.totalorder %s17, 0
      %p144 = por %p142, %p143
      %p145 = scmp.ne.s32.totalorder %s131, %s132
      %p146 = scmp.eq.s32.totalorder %s18, 3
      %p147 = por %p145, %p146
      %p149 = scmp.ne.s32.totalorder %s132, %s148
      %p150 = scmp.eq.s32.totalorder %s18, 0
      %p151 = por %p149, %p150
      %p152 = scmp.le.s32.totalorder 1, %s12
      %p153 = scmp.lt.s32.totalorder %s12, 5
      %p154 = pnand %p152, %p153
      %p155 = pneg %p154
      // Predicated region
      $region9: #{_mmd_rbf_loss.1} parent=5 // pred_check
        _
      $region10: #{_mmd_rbf_loss.1} parent=5 // pred_check_branch
        %157 = sbr.rel (%p154) target = $region12
      $region11: #{_mmd_rbf_loss.1} parent=5 // pred_region
        %s158 = ssub.s32 %s12, 1
        // Predicated region
        $region13: #{_mmd_rbf_loss.1} parent=11 // pred_check
          %p159 = pneg %p45
        $region14: #{_mmd_rbf_loss.1} parent=11 // pred_check_branch
          %161 = sbr.rel (%p159) target = $region16
        $region15: #{_mmd_rbf_loss.1} parent=11 // pred_region
          %163 = vsyncadd [#allocation3], 0
          %s165 = sshll.u32 %s0, 4
          %s166 = int_to_ptr.vmem [resolvable:$true] %s165
          %168 = dma.vmem_to_smem %s166, 16, [#allocation2], [#allocation3]
        $region16: #{_mmd_rbf_loss.1} parent=11 // pred_fallthru
          _
        // Predicated region
        $region17: #{_mmd_rbf_loss.1} parent=11 // pred_check
          %p169 = pneg %p66
        $region18: #{_mmd_rbf_loss.1} parent=11 // pred_check_branch
          %171 = sbr.rel (%p169) target = $region20
        $region19: #{_mmd_rbf_loss.1} parent=11 // pred_region
          %173 = vsyncadd [#allocation5], 0
          %s175 = sshll.u32 %s1, 4
          %s176 = int_to_ptr.vmem [resolvable:$true] %s175
          %178 = dma.vmem_to_smem %s176, 16, [#allocation4], [#allocation5]
        $region20: #{_mmd_rbf_loss.1} parent=11 // pred_fallthru
          _
      $region12: #{_mmd_rbf_loss.1} parent=5 // pred_fallthru
        _
      %p179 = scmp.lt.s32.totalorder %s12, 4
      // Predicated region
      $region21: #{_mmd_rbf_loss.1} parent=5 // pred_check
        %p180 = pneg %p179
      $region22: #{_mmd_rbf_loss.1} parent=5 // pred_check_branch
        %182 = sbr.rel (%p180) target = $region24
      $region23: #{_mmd_rbf_loss.1} parent=5 // pred_region
        // Predicated region
        $region25: #{_mmd_rbf_loss.1} parent=23 // pred_check
          %p183 = pneg %p86
        $region26: #{_mmd_rbf_loss.1} parent=23 // pred_check_branch
          %185 = sbr.rel (%p183) target = $region28
        $region27: #{_mmd_rbf_loss.1} parent=23 // pred_region
          %p186 = scmp.lt.s32.totalorder %s19, 1
          %s187 = scalar_select %p186, %s19, 1
          %s188 = smul.addr %s187, 8
          %s189 = scalar_lea.vmem %s2, %s188
        $region28: #{_mmd_rbf_loss.1} parent=23 // pred_fallthru
          _
        // Predicated region
        $region29: #{_mmd_rbf_loss.1} parent=23 // pred_check
          %p190 = pneg %p112
        $region30: #{_mmd_rbf_loss.1} parent=23 // pred_check_branch
          %192 = sbr.rel (%p190) target = $region32
        $region31: #{_mmd_rbf_loss.1} parent=23 // pred_region
          %p193 = scmp.lt.s32.totalorder %s20, 1
          %s194 = scalar_select %p193, %s20, 1
          %s195 = smul.addr %s194, 8
          %s196 = scalar_lea.vmem %s3, %s195
        $region32: #{_mmd_rbf_loss.1} parent=23 // pred_fallthru
          _
      $region24: #{_mmd_rbf_loss.1} parent=5 // pred_fallthru
        _
      %p197 = scmp.le.s32.totalorder 1, %s12
      %p198 = scmp.lt.s32.totalorder %s12, 5
      %p199 = pnand %p197, %p198
      %p200 = pneg %p199
      // Predicated region
      $region33: #{_mmd_rbf_loss.1} parent=5 // pred_check
        _
      $region34: #{_mmd_rbf_loss.1} parent=5 // pred_check_branch
        %202 = sbr.rel (%p199) target = $region36
      $region35: #{_mmd_rbf_loss.1} parent=5 // pred_region
        %s203 = ssub.s32 %s12, 1
        // Predicated region
        $region37: #{_mmd_rbf_loss.1} parent=35 // pred_check
          %p204 = pneg %p45
        $region38: #{_mmd_rbf_loss.1} parent=35 // pred_check_branch
          %206 = sbr.rel (%p204) target = $region40
        $region39: #{_mmd_rbf_loss.1} parent=35 // pred_region
          %208 = dma.done [#allocation3], 16
        $region40: #{_mmd_rbf_loss.1} parent=35 // pred_fallthru
          _
        // Predicated region
        $region41: #{_mmd_rbf_loss.1} parent=35 // pred_check
          %p209 = pneg %p66
        $region42: #{_mmd_rbf_loss.1} parent=35 // pred_check_branch
          %211 = sbr.rel (%p209) target = $region44
        $region43: #{_mmd_rbf_loss.1} parent=35 // pred_region
          %213 = dma.done [#allocation5], 16
        $region44: #{_mmd_rbf_loss.1} parent=35 // pred_fallthru
          _
        %214 = sfence
        %p215 = pneg %p45
        %p216 = pneg %p42
        %p217 = pneg %p66
        %p218 = pneg %p63
        %p219 = scmp.lt.s32.totalorder %s21, 1
        %s220 = scalar_select %p219, %s21, 1
        %s221 = smul.addr %s220, 8
        %s222 = scalar_lea.vmem %s2, %s221
        %p223 = pneg %p92
        %p224 = pneg %p89
        %p225 = scmp.lt.s32.totalorder %s22, 1
        %s226 = scalar_select %p225, %s22, 1
        %s227 = smul.addr %s226, 8
        %s228 = scalar_lea.vmem %s3, %s227
        %p229 = pneg %p118
        %p230 = pneg %p115
        %p231 = pneg %p144
        %p232 = pneg %p141
        %p233 = scmp.lt.s32.totalorder %s21, 1
        %s234 = scalar_select %p233, %s21, 1
        %s235 = smul.addr %s234, 8
        %s236 = scalar_lea.vmem %s4, %s235
        %p237 = scmp.lt.s32.totalorder %s21, 1
        %s238 = scalar_select %p237, %s21, 1
        %s239 = smul.addr %s238, 8
        %s240 = scalar_lea.vmem %s2, %s239
        %p241 = scmp.lt.s32.totalorder %s22, 1
        %s242 = scalar_select %p241, %s22, 1
        %s243 = smul.addr %s242, 8
        %s244 = scalar_lea.vmem %s3, %s243
        %p245 = scmp.lt.s32.totalorder %s21, 1
        %s246 = scalar_select %p245, %s21, 1
        %s247 = smul.addr %s246, 8
        %s248 = scalar_lea.vmem %s4, %s247
        %p249 = scmp.eq.s32.totalorder %s22, 0
        // Predicated region
        $region45: #{_mmd_rbf_loss.1} parent=35 // pred_check
          %p250 = pneg %p249
        $region46: #{_mmd_rbf_loss.1} parent=35 // pred_check_branch
          %252 = sbr.rel (%p250) target = $region48
        $region47: #{_mmd_rbf_loss.1} parent=35 // pred_region
          %253 = vst [vmem:[%s248] sm:$0xff] 0.0
        $region48: #{_mmd_rbf_loss.1} parent=35 // pred_fallthru
          _
        %p254 = scmp.ge.s32.totalorder %s22, %s21
        // Predicated region
        $region49: #{_mmd_rbf_loss.1} parent=35 // pred_check
          %p255 = pneg %p254
        $region50: #{_mmd_rbf_loss.1} parent=35 // pred_check_branch
          %257 = sbr.rel (%p255) target = $region52
        $region51: #{_mmd_rbf_loss.1} parent=35 // pred_region
          %v258 = vld [vmem:[%s240] sm:$0xff]
          %v259 = vld [vmem:[%s244] sm:$0xff]
          %vm260 = vcmask 261120
          %v262 = vsel %vm260, %v258, 0
          %v265 = vsel %vm260, %v259, 0
          %267 = vmatpush.xpose.msra.mxu0 0.0
          %268 = vmatpush.xpose.msra.mxu0 0.0
          %269 = vmatpush.xpose.msra.mxu0 0.0
          %270 = vmatpush.xpose.msra.mxu0 0.0
          %271 = vmatpush.xpose.msra.mxu0 0.0
          %272 = vmatpush.xpose.msra.mxu0 0.0
          %273 = vmatpush.xpose.msra.mxu0 0.0
          %274 = vmatpush.xpose.msra.mxu0 0.0
          %275 = vmatpush.xpose.msra.mxu0 0.0
          %276 = vmatpush.xpose.msra.mxu0 0.0
          %277 = vmatpush.xpose.msra.mxu0 0.0
          %278 = vmatpush.xpose.msra.mxu0 0.0
          %279 = vmatpush.xpose.msra.mxu0 0.0
          %280 = vmatpush.xpose.msra.mxu0 0.0
          %281 = vmatpush.xpose.msra.mxu0 0.0
          %282 = vmatpush.xpose.msra.mxu0 %v265
          %283 = vmatmul.f32.gmra.mxu0 %v262
          %v284 = vpop.f32.mrf.mxu0
          %v285 = vadd.f32 0.0, %v284
          %286 = vdwg.mxu0
          %v287 = vmul.f32 %v258, %v258
          %v288 = vsel %vm260, %v287, 0.0
          %289 = vadd.xlane.f32.xlu0 %v288
          %v290 = vpop.xlane.xlu0 %289
          %v291 = vmul.f32 %v259, %v259
          %v293 = vsel %vm260, 1.0, 0
          %v296 = vsel %vm260, %v291, 0
          %298 = vmatpush.xpose.msra.mxu0 0.0
          %299 = vmatpush.xpose.msra.mxu0 0.0
          %300 = vmatpush.xpose.msra.mxu0 0.0
          %301 = vmatpush.xpose.msra.mxu0 0.0
          %302 = vmatpush.xpose.msra.mxu0 0.0
          %303 = vmatpush.xpose.msra.mxu0 0.0
          %304 = vmatpush.xpose.msra.mxu0 0.0
          %305 = vmatpush.xpose.msra.mxu0 0.0
          %306 = vmatpush.xpose.msra.mxu0 0.0
          %307 = vmatpush.xpose.msra.mxu0 0.0
          %308 = vmatpush.xpose.msra.mxu0 0.0
          %309 = vmatpush.xpose.msra.mxu0 0.0
          %310 = vmatpush.xpose.msra.mxu0 0.0
          %311 = vmatpush.xpose.msra.mxu0 0.0
          %312 = vmatpush.xpose.msra.mxu0 0.0
          %313 = vmatpush.xpose.msra.mxu0 %v296
          %314 = vmatmul.f32.gmra.mxu0 %v293
          %v315 = vpop.f32.mrf.mxu0
          %v316 = vadd.f32 0.0, %v315
          %317 = vdwg.mxu0
          %v318 = vperm.slane %v316, 0
          %v319 = vadd.f32 %v290, %v318
          %v320 = vmul.f32 %v285, 2.0
          %v321 = vsub.f32 %v319, %v320
          %v322 = vmax.f32 %v321, 0.0
          %s323 = sld [smem:[#allocation4 + $0x2]]
          %v324 = vstv %s323
          %v325 = vmul.f32 %v322, %v324
          %v326 = vmul.f32 %v325, 1.442695
          %v327 = vpow.pop %v326
          %s328 = sld [smem:[#allocation4 + $0x3]]
          %v329 = vstv %s328
          %v330 = vmul.f32 %v322, %v329
          %v331 = vmul.f32 %v330, 1.442695
          %v332 = vpow.pop %v331
          %v333 = vadd.f32 %v327, %v332
          %s334 = sld [smem:[#allocation4 + $0x4]]
          %v335 = vstv %s334
          %v336 = vmul.f32 %v322, %v335
          %v337 = vmul.f32 %v336, 1.442695
          %v338 = vpow.pop %v337
          %v339 = vadd.f32 %v333, %v338
          %s340 = sld [smem:[#allocation4 + $0x5]]
          %v341 = vstv %s340
          %v342 = vmul.f32 %v322, %v341
          %v343 = vmul.f32 %v342, 1.442695
          %v344 = vpow.pop %v343
          %v345 = vadd.f32 %v339, %v344
          %s346 = sld [smem:[#allocation4 + $0x6]]
          %v347 = vstv %s346
          %v348 = vmul.f32 %v322, %v347
          %v349 = vmul.f32 %v348, 1.442695
          %v350 = vpow.pop %v349
          %v351 = vadd.f32 %v345, %v350
          %s352 = sld [smem:[#allocation2]]
          %s353 = sld [smem:[#allocation2 + $0x1]]
          %s354 = sld [smem:[#allocation4]]
          %s355 = sld [smem:[#allocation4 + $0x1]]
          %s356 = smul.u32 %s21, 8
          %v357 = vlaneseq
          %v358 = vshrl.u32 %v357, 7
          %v359 = vstv %s356
          %v360 = vadd.s32 %v359, %v358
          %s361 = smul.u32 %s22, 8
          %v362 = vlaneseq
          %v363 = vand.u32 %v362, 127
          %v364 = vstv %s361
          %v365 = vadd.s32 %v364, %v363
          %v366 = vstv %s352
          %vm367 = vcmp.lt.s32.totalorder %v360, %v366
          %v368 = vstv %s353
          %vm369 = vcmp.lt.s32.totalorder %v360, %v368
          %v370 = vstv %s355
          %v371 = vsel %vm369, %v370, 0.0
          %v372 = vstv %s354
          %v373 = vsel %vm367, %v372, %v371
          %vm374 = vcmp.lt.s32.totalorder %v365, %v366
          %vm375 = vcmp.lt.s32.totalorder %v365, %v368
          %v376 = vsel %vm375, %v370, 0.0
          %v377 = vsel %vm374, %v372, %v376
          %v378 = vmul.f32 %v351, %v377
          %vm379 = vcmask 64512
          %v380 = vsel %vm379, %v378, 0.0
          %381 = vadd.xlane.f32.xlu0 %v380
          %v382 = vpop.xlane.xlu0 %381
          %v383 = vmul.f32 %v382, %v373
          %vm384 = vcmask 7168
          %v385 = vsel %vm384, %v383, 0.0
          %386 = vadd.xlane.f32.xlu0 %v385
          %v387 = vpop.xlane.xlu0 %386
          %v388 = vrot.slane %v387, 4
          %v389 = vadd.f32 %v387, %v388
          %v390 = vrot.slane %v389, 2
          %v391 = vadd.f32 %v389, %v390
          %v392 = vrot.slane %v391, 1
          %v393 = vadd.f32 %v391, %v392
          %s394 = vtos %v393
          %p395 = scmp.eq.s32.totalorder %s21, %s22
          %s396 = scalar_select %p395, 1.0, 2.0
          %s397 = smul.f32 %s394, %s396
          %v398 = vld [vmem:[%s248] sm:$0xff]
          %v399 = vstv %s397
          %v400 = vadd.f32 %v398, %v399
          %401 = vst [vmem:[%s248] sm:$0xff] %v400
        $region52: #{_mmd_rbf_loss.1} parent=35 // pred_fallthru
          _
        %p402 = scmp.lt.s32.totalorder %s21, 1
        %s403 = scalar_select %p402, %s21, 1
        %s404 = smul.addr %s403, 8
        %s405 = scalar_lea.vmem %s4, %s404
        // Predicated region
        $region53: #{_mmd_rbf_loss.1} parent=35 // pred_check
          %p406 = pneg %p141
        $region54: #{_mmd_rbf_loss.1} parent=35 // pred_check_branch
          %408 = sbr.rel (%p406) target = $region56
        $region55: #{_mmd_rbf_loss.1} parent=35 // pred_region
          _
        $region56: #{_mmd_rbf_loss.1} parent=35 // pred_fallthru
          _
      $region36: #{_mmd_rbf_loss.1} parent=5 // pred_fallthru
        _
      %p409 = scmp.le.s32.totalorder 2, %s12
      // Predicated region
      $region57: #{_mmd_rbf_loss.1} parent=5 // pred_check
        %p410 = pneg %p409
      $region58: #{_mmd_rbf_loss.1} parent=5 // pred_check_branch
        %412 = sbr.rel (%p410) target = $region60
      $region59: #{_mmd_rbf_loss.1} parent=5 // pred_region
        %s413 = ssub.s32 %s12, 2
        // Predicated region
        $region61: #{_mmd_rbf_loss.1} parent=59 // pred_check
          %p414 = pneg %p147
        $region62: #{_mmd_rbf_loss.1} parent=59 // pred_check_branch
          %416 = sbr.rel (%p414) target = $region64
        $region63: #{_mmd_rbf_loss.1} parent=59 // pred_region
          %p417 = scmp.lt.s32.totalorder %s23, 1
          %s418 = scalar_select %p417, %s23, 1
          %s419 = smul.addr %s418, 8
          %s420 = scalar_lea.vmem %s4, %s419
        $region64: #{_mmd_rbf_loss.1} parent=59 // pred_fallthru
          _
      $region60: #{_mmd_rbf_loss.1} parent=5 // pred_fallthru
        _
    $region6: #{_mmd_rbf_loss.1} parent=1 // loop_footer
      %s16 = sadd.s32 1, %s12
    $region7: #{_mmd_rbf_loss.1} parent=1 // loop_footer_branch
      %11 = sbr.rel target = $region3
    $region8: #{_mmd_rbf_loss.1} parent=1 // loop_exit
      _
    %421 = vsyncpa [#allocation3], 1
    %s422 = scalar_lea.sflag [#allocation3], 1
    %423 = vsyncpa %s422, 1
    %424 = vsyncpa [#allocation5], 1

</llo_original>
